<compile_context>
chip_gen: v5e
topology: v5e:2x2
jax: 0.10.0
libtpu: 0.0.40
codegen_flags: <defaults>
</compile_context>

<pallas_src>
import math

import numpy as np
import jax
import jax.numpy as jnp
from jax.experimental import pallas as pl
from jax.experimental.pallas import tpu as pltpu

# ---- model hyper-parameters (small, consistent with the module) ----
N = 8            # batch
IN = 16          # input_size
HID = 32         # hidden_size
OUT = 4          # output_size
HEADS = 4
HEAD_DIM = HID // HEADS
BN_EPS = 1e-5

PACK = HEADS * HID       # 128  == one vreg lane width
PAIRS = HEADS * HEADS    # 16   (h, g) head pairs

# ---- packed-parameter slab layout (rows x 384 lanes, f32) ----
LANES = 3 * PACK         # 384
R_QKV = 0                # 3 layers x (32 rows, 384 lanes)   fused q/k/v weights
R_WO = 96                # 128 rows; layer l at lanes [128l, 128l+32)
R_S = 224                # 128 rows, lanes [0,16)            energy block-sum matrix
R_EG = 352               # 16 rows,  lanes [0,256)           [E | G@E]
R_WIN = 368              # 16 rows,  lanes [0,32)            scaler-folded input_fc weight
R_WOUT = 384             # 32 rows,  lanes [0,128)           lane-padded fc_out weight
R_VEC = 416              # 8 rows,   lanes [0,128)           bias / scale vectors
TOTAL_ROWS = 424         # multiple of 8


def attention_model_kernel(x_ref, p_ref, o_ref):
    rows = x_ref.shape[0]

    # ---- static views into the packed slab (zero runtime cost) ----
    S = p_ref[R_S:R_S + PACK, 0:PAIRS]                 # (128, 16)
    EG = p_ref[R_EG:R_EG + PAIRS, 0:2 * PACK]          # (16, 256)  [E | G@E]
    w_in = p_ref[R_WIN:R_WIN + IN, 0:HID]              # (16, 32)   scaler folded in
    w_out = p_ref[R_WOUT:R_WOUT + HID, 0:PACK]         # (32, 128)  lane-padded
    vec = p_ref[R_VEC:R_VEC + 8, 0:PACK]               # (8, 128)
    b_out = vec[0:1, :]                                 # (1, 128)  lane-padded fc_out bias
    b_in = vec[1:2, 0:HID]                              # (1, 32)   scaler-folded input_fc bias
    # Hoist the BN-scale broadcast out of the unrolled loop (no CSE of broadcasts).
    bn_scale_b = jnp.broadcast_to(vec[2:3, 0:HID], (rows, HID))

    # input_fc + ReLU   (Dropout = identity at inference)
    x = jnp.dot(x_ref[...], w_in, preferred_element_type=jnp.float32) + b_in
    x = jnp.maximum(x, 0.0)

    # three residual self-attention blocks (unrolled)
    for l in range(3):
        wqkv_l = p_ref[R_QKV + 32 * l:R_QKV + 32 * (l + 1), :]       # (32, 384)
        wo_l = p_ref[R_WO:R_WO + PACK, 128 * l:128 * l + HID]        # (128, 32)

        # fused Q/K/V projection, already expanded to the 128-lane head layout:
        #   q_rep[:, h*HID + g*hd + d] = q[:, h*hd + d]   (already * 1/sqrt(HID))
        #   k_til[:, h*HID + g*hd + d] = k[:, g*hd + d]
        #   v_til[:, h*HID + g*hd + d] = v[:, g*hd + d]
        qkv = jnp.dot(x, wqkv_l, preferred_element_type=jnp.float32)  # (rows, 384)
        q_rep = qkv[:, 0:PACK]
        k_til = qkv[:, PACK:2 * PACK]
        v_til = qkv[:, 2 * PACK:3 * PACK]

        # energies for all 16 (h, g) pairs: full-width VPU multiply + MXU block-sum
        e = jnp.dot(q_rep * k_til, S, preferred_element_type=jnp.float32)  # (rows, 16)

        # softmax over g within each head (row max is constant within every group,
        # so subtracting it leaves the per-group softmax unchanged)
        mrow = jnp.max(e, axis=-1, keepdims=True)
        pexp = jnp.exp(e - mrow)

        # one MXU pass gives numerator-broadcast AND denominator-broadcast:
        #   num[:, b] = p[:, b//hd],  den[:, b] = sum_{g in head(b)} p[:, ...]
        num_den = jnp.dot(pexp, EG, preferred_element_type=jnp.float32)    # (rows, 256)
        a_exp = num_den[:, 0:PACK] * pl.reciprocal(num_den[:, PACK:2 * PACK],
                                                   approx=False)

        # attention @ V:  multiply V (VPU), collapse over g while applying the
        # fc_out weight (folded into wo_l) on the MXU.
        a = jnp.dot(a_exp * v_til, wo_l, preferred_element_type=jnp.float32)  # (rows, 32)

        # residual + fused BatchNorm affine (fc_out bias folded into bias_l) + ReLU
        bias_l = vec[3 + l:4 + l, 0:HID]
        x = jnp.maximum((a + x) * bn_scale_b + bias_l, 0.0)
        # TODO(synk): Dropout in training mode (random masking) and BatchNorm1d
        # training-mode batch statistics have no deterministic eval equivalent;
        # eval-mode (identity dropout, running stats) is implemented.

    # fc_out, lane-padded to 128 for a dense store; wrapper slices [:, :OUT]
    o_ref[...] = jnp.dot(x, w_out, preferred_element_type=jnp.float32) + b_out


def pack_params(p):
    """Fold constants and pack all parameters + selection matrices into one slab."""
    b = np.arange(PACK)
    a = np.arange(HID)
    c = np.arange(PAIRS)

    # R: (32,128) q-expansion  R[a, b] = 1 iff (b//HID == a//hd) and (b%hd == a%hd)
    R = ((b[None, :] // HID == a[:, None] // HEAD_DIM)
         & (b[None, :] % HEAD_DIM == a[:, None] % HEAD_DIM)).astype(np.float32)
    # T: (32,128) k/v tiling   T[a, b] = 1 iff b % HID == a
    T = (b[None, :] % HID == a[:, None]).astype(np.float32)
    C = R.T                                                        # (128,32) head re-collapse

    # Selection constants, built host-side.
    S = (c[None, :] == b[:, None] // HEAD_DIM).astype(np.float32)         # (128,16)
    E = (c[:, None] == b[None, :] // HEAD_DIM).astype(np.float32)         # (16,128)
    G = (c[:, None] // HEADS == c[None, :] // HEADS).astype(np.float32)   # (16,16)
    EG = np.concatenate([E, G @ E], axis=1)                               # (16,256)

    wq = np.asarray(p["wq"], np.float32)
    wk = np.asarray(p["wk"], np.float32)
    wv = np.asarray(p["wv"], np.float32)
    wo = np.asarray(p["wo"], np.float32)
    bo = np.asarray(p["bo"], np.float32).reshape(3, HID)

    # fold 1/sqrt(HID) into Wq; fold head expansion into the projection weights
    wqkv = np.concatenate([(wq / math.sqrt(HID)) @ R, wk @ T, wv @ T],
                          axis=-1)                                   # (3, 32, 384)
    wo_exp = np.matmul(C, wo)                                        # (3, 128, 32)

    # fold RobustScaler into input_fc
    center = np.asarray(p["center"], np.float32)
    scale = np.asarray(p["scale"], np.float32)
    w_in = np.asarray(p["w_in"], np.float32)
    b_in = np.asarray(p["b_in"], np.float32)
    w_in_s = w_in / scale.reshape(IN, 1)
    b_in_s = b_in - (center / scale) @ w_in                          # (1, HID)

    # fold BatchNorm (eval mode) into a single affine; fold fc_out bias per block
    gamma = np.asarray(p["gamma"], np.float32)
    beta = np.asarray(p["beta"], np.float32)
    rmean = np.asarray(p["rmean"], np.float32)
    rvar = np.asarray(p["rvar"], np.float32)
    bn_scale = gamma / np.sqrt(rvar + BN_EPS)                        # (1, HID)
    bn_bias = beta - rmean * bn_scale                                # (1, HID)
    biases = bo * bn_scale + bn_bias                                 # (3, HID)

    w_out = np.asarray(p["w_out"], np.float32)
    b_out = np.asarray(p["b_out"], np.float32)

    slab = np.zeros((TOTAL_ROWS, LANES), np.float32)
    for l in range(3):
        slab[R_QKV + 32 * l:R_QKV + 32 * (l + 1), :] = wqkv[l]
        slab[R_WO:R_WO + PACK, 128 * l:128 * l + HID] = wo_exp[l]
    slab[R_S:R_S + PACK, 0:PAIRS] = S
    slab[R_EG:R_EG + PAIRS, 0:2 * PACK] = EG
    slab[R_WIN:R_WIN + IN, 0:HID] = w_in_s
    slab[R_WOUT:R_WOUT + HID, 0:OUT] = w_out                         # lane-padded
    slab[R_VEC + 0, 0:OUT] = b_out.reshape(-1)                       # lane-padded
    slab[R_VEC + 1, 0:HID] = b_in_s.reshape(-1)
    slab[R_VEC + 2, 0:HID] = bn_scale.reshape(-1)
    slab[R_VEC + 3:R_VEC + 6, 0:HID] = biases

    return {"slab": jnp.asarray(slab)}


def attention_model(x, packed):
    n = x.shape[0]
    # Row tile: multiple of 8, capped at 256 (weights stay resident across tiles).
    tile = max(8, min(256, ((n + 7) // 8) * 8))
    n_pad = ((n + tile - 1) // tile) * tile
    if n_pad != n:
        x = jnp.pad(x, ((0, n_pad - n), (0, 0)))

    out = pl.pallas_call(
        attention_model_kernel,
        out_shape=jax.ShapeDtypeStruct((n_pad, PACK), jnp.float32),
        grid_spec=pltpu.PrefetchScalarGridSpec(
            num_scalar_prefetch=0,
            grid=(n_pad // tile,),
            in_specs=[
                pl.BlockSpec((tile, IN), lambda i: (i, 0)),
                pl.BlockSpec((TOTAL_ROWS, LANES), lambda i: (0, 0)),  # resident params
            ],
            out_specs=pl.BlockSpec((tile, PACK), lambda i: (i, 0)),
        ),
        compiler_params=pltpu.CompilerParams(
            dimension_semantics=("parallel",)),
    )(x, packed["slab"])
    return out[:n, :OUT]


# ------------------------- pure-JAX reference -------------------------
def reference(x, p):
    x = (x - p["center"]) / p["scale"]
    x = jnp.maximum(x @ p["w_in"] + p["b_in"], 0.0)
    inv_std = 1.0 / jnp.sqrt(p["rvar"] + BN_EPS)
    for l in range(3):
        q = (x @ p["wq"][l]).reshape(-1, HEADS, HEAD_DIM)
        k = (x @ p["wk"][l]).reshape(-1, HEADS, HEAD_DIM)
        v = (x @ p["wv"][l]).reshape(-1, HEADS, HEAD_DIM)
        e = jnp.einsum("nhd,ngd->nhg", q, k) / math.sqrt(HID)
        a = jax.nn.softmax(e, axis=2)
        o = jnp.einsum("nhg,ngd->nhd", a, v).reshape(-1, HID)
        o = o @ p["wo"][l] + p["bo"][l]
        x = (o + x - p["rmean"]) * inv_std * p["gamma"] + p["beta"]
        x = jnp.maximum(x, 0.0)
    return x @ p["w_out"] + p["b_out"]


def init_params(key):
    ks = jax.random.split(key, 16)
    s = 0.1  # small init scale
    return {
        # RobustScaler (center = "median", scale = "IQR" > 0), deterministic
        "center": jax.random.normal(ks[0], (1, IN), jnp.float32) * 0.5,
        "scale": 0.5 + jax.random.uniform(ks[1], (1, IN), jnp.float32),
        # input_fc
        "w_in": jax.random.normal(ks[2], (IN, HID), jnp.float32) * s,
        "b_in": jax.random.normal(ks[3], (1, HID), jnp.float32) * s,
        # three SelfAttention blocks, stacked on a leading axis
        "wq": jax.random.normal(ks[4], (3, HID, HID), jnp.float32) * s,
        "wk": jax.random.normal(ks[5], (3, HID, HID), jnp.float32) * s,
        "wv": jax.random.normal(ks[6], (3, HID, HID), jnp.float32) * s,
        "wo": jax.random.normal(ks[7], (3, HID, HID), jnp.float32) * s,
        "bo": jax.random.normal(ks[8], (3, 1, HID), jnp.float32) * s,
        # BatchNorm1d (eval-mode running stats + affine)
        "gamma": 1.0 + jax.random.normal(ks[9], (1, HID), jnp.float32) * 0.05,
        "beta": jax.random.normal(ks[10], (1, HID), jnp.float32) * 0.05,
        "rmean": jnp.zeros((1, HID), jnp.float32),
        "rvar": jnp.ones((1, HID), jnp.float32),
        # fc_out
        "w_out": jax.random.normal(ks[11], (HID, OUT), jnp.float32) * s,
        "b_out": jax.random.normal(ks[12], (1, OUT), jnp.float32) * s,
    }


if __name__ == "__main__":
    key = jax.random.PRNGKey(0)
    k_x, k_p = jax.random.split(key)
    x = jax.random.normal(k_x, (N, IN), jnp.float32)
    params = init_params(k_p)
    packed = pack_params(params)

    out = jax.block_until_ready(attention_model(x, packed))
    ref = jax.block_until_ready(reference(x, params))

    assert out.shape == (N, OUT), out.shape
    assert jnp.allclose(out, ref, rtol=1e-5, atol=1e-5), (
        f"max abs err {jnp.max(jnp.abs(out - ref))}")
    print("KERNEL_OK")
</pallas_src>

<mosaic_0001>
module attributes {stable_mosaic.version = 11 : i64} {
  func.func @attention_model_kernel(%arg0: i32, %arg1: memref<8x16xf32, #tpu.memory_space<vmem>>, %arg2: memref<424x384xf32, #tpu.memory_space<vmem>>, %arg3: memref<8x128xf32, #tpu.memory_space<vmem>>) attributes {dimension_semantics = [#tpu.dimension_semantics<parallel>], iteration_bounds = array<i64: 1>, scalar_prefetch = 0 : i64, scratch_operands = 0 : i64, tpu.core_type = #tpu.core_type<tc>, window_params = [{transform_indices = @transform_0, window_bounds = array<i64: 8, 16>}, {pipeline_mode = #tpu.pipeline_mode<synchronous>, transform_indices = @transform_1, window_bounds = array<i64: 424, 384>}, {transform_indices = @transform_2, window_bounds = array<i64: 8, 128>}]} {
    %c224 = arith.constant 224 : index
    %c0 = arith.constant 0 : index
    %0 = vector.load %arg2[%c224, %c0] : memref<424x384xf32, #tpu.memory_space<vmem>>, vector<128x16xf32>
    %c352 = arith.constant 352 : index
    %c0_0 = arith.constant 0 : index
    %1 = vector.load %arg2[%c352, %c0_0] : memref<424x384xf32, #tpu.memory_space<vmem>>, vector<16x256xf32>
    %c368 = arith.constant 368 : index
    %c0_1 = arith.constant 0 : index
    %2 = vector.load %arg2[%c368, %c0_1] : memref<424x384xf32, #tpu.memory_space<vmem>>, vector<16x32xf32>
    %c384 = arith.constant 384 : index
    %c0_2 = arith.constant 0 : index
    %3 = vector.load %arg2[%c384, %c0_2] : memref<424x384xf32, #tpu.memory_space<vmem>>, vector<32x128xf32>
    %c416 = arith.constant 416 : index
    %c0_3 = arith.constant 0 : index
    %4 = vector.load %arg2[%c416, %c0_3] : memref<424x384xf32, #tpu.memory_space<vmem>>, vector<8x128xf32>
    %5 = vector.extract_strided_slice %4 {offsets = [0, 0], sizes = [1, 128], strides = [1, 1]} : vector<8x128xf32> to vector<1x128xf32>
    %6 = vector.extract_strided_slice %4 {offsets = [1, 0], sizes = [1, 32], strides = [1, 1]} : vector<8x128xf32> to vector<1x32xf32>
    %7 = vector.extract_strided_slice %4 {offsets = [2, 0], sizes = [1, 32], strides = [1, 1]} : vector<8x128xf32> to vector<1x32xf32>
    %8 = vector.shape_cast %7 : vector<1x32xf32> to vector<1x32xf32>
    %9 = vector.broadcast %8 : vector<1x32xf32> to vector<8x32xf32>
    %c0_4 = arith.constant 0 : index
    %c0_5 = arith.constant 0 : index
    %10 = vector.load %arg1[%c0_4, %c0_5] : memref<8x16xf32, #tpu.memory_space<vmem>>, vector<8x16xf32>
    %cst = arith.constant dense<0.000000e+00> : vector<8x32xf32>
    %11 = tpu.matmul %10, %2, %cst {dimension_numbers = #tpu.dot_dimension_numbers<[1], [0], [0], [1], [0, 0, 1, 1], [], []>} : vector<8x16xf32>, vector<16x32xf32>, vector<8x32xf32> -> vector<8x32xf32>
    %12 = vector.broadcast %6 : vector<1x32xf32> to vector<8x32xf32>
    %13 = arith.addf %11, %12 : vector<8x32xf32>
    %cst_6 = arith.constant 0.000000e+00 : f32
    %14 = vector.broadcast %cst_6 : f32 to vector<8x32xf32>
    %15 = arith.maximumf %13, %14 : vector<8x32xf32>
    %c0_7 = arith.constant 0 : index
    %c0_8 = arith.constant 0 : index
    %16 = vector.load %arg2[%c0_7, %c0_8] : memref<424x384xf32, #tpu.memory_space<vmem>>, vector<32x384xf32>
    %c96 = arith.constant 96 : index
    %c0_9 = arith.constant 0 : index
    %17 = vector.load %arg2[%c96, %c0_9] : memref<424x384xf32, #tpu.memory_space<vmem>>, vector<128x32xf32>
    %cst_10 = arith.constant dense<0.000000e+00> : vector<8x384xf32>
    %18 = tpu.matmul %15, %16, %cst_10 {dimension_numbers = #tpu.dot_dimension_numbers<[1], [0], [0], [1], [0, 0, 1, 1], [], []>} : vector<8x32xf32>, vector<32x384xf32>, vector<8x384xf32> -> vector<8x384xf32>
    %19 = vector.extract_strided_slice %18 {offsets = [0, 0], sizes = [8, 128], strides = [1, 1]} : vector<8x384xf32> to vector<8x128xf32>
    %20 = vector.extract_strided_slice %18 {offsets = [0, 128], sizes = [8, 128], strides = [1, 1]} : vector<8x384xf32> to vector<8x128xf32>
    %21 = vector.extract_strided_slice %18 {offsets = [0, 256], sizes = [8, 128], strides = [1, 1]} : vector<8x384xf32> to vector<8x128xf32>
    %22 = arith.mulf %19, %20 : vector<8x128xf32>
    %cst_11 = arith.constant dense<0.000000e+00> : vector<8x16xf32>
    %23 = tpu.matmul %22, %0, %cst_11 {dimension_numbers = #tpu.dot_dimension_numbers<[1], [0], [0], [1], [0, 0, 1, 1], [], []>} : vector<8x128xf32>, vector<128x16xf32>, vector<8x16xf32> -> vector<8x16xf32>
    %cst_12 = arith.constant dense<0xFF800000> : vector<8xf32>
    %24 = vector.multi_reduction <maximumf>, %23, %cst_12 [1] : vector<8x16xf32> to vector<8xf32>
    %25 = vector.shape_cast %24 : vector<8xf32> to vector<8x1xf32>
    %26 = vector.broadcast %25 : vector<8x1xf32> to vector<8x16xf32>
    %27 = arith.subf %23, %26 : vector<8x16xf32>
    %28 = math.exp %27 : vector<8x16xf32>
    %cst_13 = arith.constant dense<0.000000e+00> : vector<8x256xf32>
    %29 = tpu.matmul %28, %1, %cst_13 {dimension_numbers = #tpu.dot_dimension_numbers<[1], [0], [0], [1], [0, 0, 1, 1], [], []>} : vector<8x16xf32>, vector<16x256xf32>, vector<8x256xf32> -> vector<8x256xf32>
    %30 = vector.extract_strided_slice %29 {offsets = [0, 0], sizes = [8, 128], strides = [1, 1]} : vector<8x256xf32> to vector<8x128xf32>
    %31 = vector.extract_strided_slice %29 {offsets = [0, 128], sizes = [8, 128], strides = [1, 1]} : vector<8x256xf32> to vector<8x128xf32>
    %32 = tpu.reciprocal %31 : vector<8x128xf32> -> vector<8x128xf32>
    %33 = arith.mulf %30, %32 : vector<8x128xf32>
    %34 = arith.mulf %33, %21 : vector<8x128xf32>
    %cst_14 = arith.constant dense<0.000000e+00> : vector<8x32xf32>
    %35 = tpu.matmul %34, %17, %cst_14 {dimension_numbers = #tpu.dot_dimension_numbers<[1], [0], [0], [1], [0, 0, 1, 1], [], []>} : vector<8x128xf32>, vector<128x32xf32>, vector<8x32xf32> -> vector<8x32xf32>
    %36 = vector.extract_strided_slice %4 {offsets = [3, 0], sizes = [1, 32], strides = [1, 1]} : vector<8x128xf32> to vector<1x32xf32>
    %37 = arith.addf %35, %15 : vector<8x32xf32>
    %38 = arith.mulf %37, %9 : vector<8x32xf32>
    %39 = vector.broadcast %36 : vector<1x32xf32> to vector<8x32xf32>
    %40 = arith.addf %38, %39 : vector<8x32xf32>
    %cst_15 = arith.constant 0.000000e+00 : f32
    %41 = vector.broadcast %cst_15 : f32 to vector<8x32xf32>
    %42 = arith.maximumf %40, %41 : vector<8x32xf32>
    %c32 = arith.constant 32 : index
    %c0_16 = arith.constant 0 : index
    %43 = vector.load %arg2[%c32, %c0_16] : memref<424x384xf32, #tpu.memory_space<vmem>>, vector<32x384xf32>
    %c96_17 = arith.constant 96 : index
    %c128 = arith.constant 128 : index
    %44 = vector.load %arg2[%c96_17, %c128] : memref<424x384xf32, #tpu.memory_space<vmem>>, vector<128x32xf32>
    %cst_18 = arith.constant dense<0.000000e+00> : vector<8x384xf32>
    %45 = tpu.matmul %42, %43, %cst_18 {dimension_numbers = #tpu.dot_dimension_numbers<[1], [0], [0], [1], [0, 0, 1, 1], [], []>} : vector<8x32xf32>, vector<32x384xf32>, vector<8x384xf32> -> vector<8x384xf32>
    %46 = vector.extract_strided_slice %45 {offsets = [0, 0], sizes = [8, 128], strides = [1, 1]} : vector<8x384xf32> to vector<8x128xf32>
    %47 = vector.extract_strided_slice %45 {offsets = [0, 128], sizes = [8, 128], strides = [1, 1]} : vector<8x384xf32> to vector<8x128xf32>
    %48 = vector.extract_strided_slice %45 {offsets = [0, 256], sizes = [8, 128], strides = [1, 1]} : vector<8x384xf32> to vector<8x128xf32>
    %49 = arith.mulf %46, %47 : vector<8x128xf32>
    %cst_19 = arith.constant dense<0.000000e+00> : vector<8x16xf32>
    %50 = tpu.matmul %49, %0, %cst_19 {dimension_numbers = #tpu.dot_dimension_numbers<[1], [0], [0], [1], [0, 0, 1, 1], [], []>} : vector<8x128xf32>, vector<128x16xf32>, vector<8x16xf32> -> vector<8x16xf32>
    %cst_20 = arith.constant dense<0xFF800000> : vector<8xf32>
    %51 = vector.multi_reduction <maximumf>, %50, %cst_20 [1] : vector<8x16xf32> to vector<8xf32>
    %52 = vector.shape_cast %51 : vector<8xf32> to vector<8x1xf32>
    %53 = vector.broadcast %52 : vector<8x1xf32> to vector<8x16xf32>
    %54 = arith.subf %50, %53 : vector<8x16xf32>
    %55 = math.exp %54 : vector<8x16xf32>
    %cst_21 = arith.constant dense<0.000000e+00> : vector<8x256xf32>
    %56 = tpu.matmul %55, %1, %cst_21 {dimension_numbers = #tpu.dot_dimension_numbers<[1], [0], [0], [1], [0, 0, 1, 1], [], []>} : vector<8x16xf32>, vector<16x256xf32>, vector<8x256xf32> -> vector<8x256xf32>
    %57 = vector.extract_strided_slice %56 {offsets = [0, 0], sizes = [8, 128], strides = [1, 1]} : vector<8x256xf32> to vector<8x128xf32>
    %58 = vector.extract_strided_slice %56 {offsets = [0, 128], sizes = [8, 128], strides = [1, 1]} : vector<8x256xf32> to vector<8x128xf32>
    %59 = tpu.reciprocal %58 : vector<8x128xf32> -> vector<8x128xf32>
    %60 = arith.mulf %57, %59 : vector<8x128xf32>
    %61 = arith.mulf %60, %48 : vector<8x128xf32>
    %cst_22 = arith.constant dense<0.000000e+00> : vector<8x32xf32>
    %62 = tpu.matmul %61, %44, %cst_22 {dimension_numbers = #tpu.dot_dimension_numbers<[1], [0], [0], [1], [0, 0, 1, 1], [], []>} : vector<8x128xf32>, vector<128x32xf32>, vector<8x32xf32> -> vector<8x32xf32>
    %63 = vector.extract_strided_slice %4 {offsets = [4, 0], sizes = [1, 32], strides = [1, 1]} : vector<8x128xf32> to vector<1x32xf32>
    %64 = arith.addf %62, %42 : vector<8x32xf32>
    %65 = arith.mulf %64, %9 : vector<8x32xf32>
    %66 = vector.broadcast %63 : vector<1x32xf32> to vector<8x32xf32>
    %67 = arith.addf %65, %66 : vector<8x32xf32>
    %cst_23 = arith.constant 0.000000e+00 : f32
    %68 = vector.broadcast %cst_23 : f32 to vector<8x32xf32>
    %69 = arith.maximumf %67, %68 : vector<8x32xf32>
    %c64 = arith.constant 64 : index
    %c0_24 = arith.constant 0 : index
    %70 = vector.load %arg2[%c64, %c0_24] : memref<424x384xf32, #tpu.memory_space<vmem>>, vector<32x384xf32>
    %c96_25 = arith.constant 96 : index
    %c256 = arith.constant 256 : index
    %71 = vector.load %arg2[%c96_25, %c256] : memref<424x384xf32, #tpu.memory_space<vmem>>, vector<128x32xf32>
    %cst_26 = arith.constant dense<0.000000e+00> : vector<8x384xf32>
    %72 = tpu.matmul %69, %70, %cst_26 {dimension_numbers = #tpu.dot_dimension_numbers<[1], [0], [0], [1], [0, 0, 1, 1], [], []>} : vector<8x32xf32>, vector<32x384xf32>, vector<8x384xf32> -> vector<8x384xf32>
    %73 = vector.extract_strided_slice %72 {offsets = [0, 0], sizes = [8, 128], strides = [1, 1]} : vector<8x384xf32> to vector<8x128xf32>
    %74 = vector.extract_strided_slice %72 {offsets = [0, 128], sizes = [8, 128], strides = [1, 1]} : vector<8x384xf32> to vector<8x128xf32>
    %75 = vector.extract_strided_slice %72 {offsets = [0, 256], sizes = [8, 128], strides = [1, 1]} : vector<8x384xf32> to vector<8x128xf32>
    %76 = arith.mulf %73, %74 : vector<8x128xf32>
    %cst_27 = arith.constant dense<0.000000e+00> : vector<8x16xf32>
    %77 = tpu.matmul %76, %0, %cst_27 {dimension_numbers = #tpu.dot_dimension_numbers<[1], [0], [0], [1], [0, 0, 1, 1], [], []>} : vector<8x128xf32>, vector<128x16xf32>, vector<8x16xf32> -> vector<8x16xf32>
    %cst_28 = arith.constant dense<0xFF800000> : vector<8xf32>
    %78 = vector.multi_reduction <maximumf>, %77, %cst_28 [1] : vector<8x16xf32> to vector<8xf32>
    %79 = vector.shape_cast %78 : vector<8xf32> to vector<8x1xf32>
    %80 = vector.broadcast %79 : vector<8x1xf32> to vector<8x16xf32>
    %81 = arith.subf %77, %80 : vector<8x16xf32>
    %82 = math.exp %81 : vector<8x16xf32>
    %cst_29 = arith.constant dense<0.000000e+00> : vector<8x256xf32>
    %83 = tpu.matmul %82, %1, %cst_29 {dimension_numbers = #tpu.dot_dimension_numbers<[1], [0], [0], [1], [0, 0, 1, 1], [], []>} : vector<8x16xf32>, vector<16x256xf32>, vector<8x256xf32> -> vector<8x256xf32>
    %84 = vector.extract_strided_slice %83 {offsets = [0, 0], sizes = [8, 128], strides = [1, 1]} : vector<8x256xf32> to vector<8x128xf32>
    %85 = vector.extract_strided_slice %83 {offsets = [0, 128], sizes = [8, 128], strides = [1, 1]} : vector<8x256xf32> to vector<8x128xf32>
    %86 = tpu.reciprocal %85 : vector<8x128xf32> -> vector<8x128xf32>
    %87 = arith.mulf %84, %86 : vector<8x128xf32>
    %88 = arith.mulf %87, %75 : vector<8x128xf32>
    %cst_30 = arith.constant dense<0.000000e+00> : vector<8x32xf32>
    %89 = tpu.matmul %88, %71, %cst_30 {dimension_numbers = #tpu.dot_dimension_numbers<[1], [0], [0], [1], [0, 0, 1, 1], [], []>} : vector<8x128xf32>, vector<128x32xf32>, vector<8x32xf32> -> vector<8x32xf32>
    %90 = vector.extract_strided_slice %4 {offsets = [5, 0], sizes = [1, 32], strides = [1, 1]} : vector<8x128xf32> to vector<1x32xf32>
    %91 = arith.addf %89, %69 : vector<8x32xf32>
    %92 = arith.mulf %91, %9 : vector<8x32xf32>
    %93 = vector.broadcast %90 : vector<1x32xf32> to vector<8x32xf32>
    %94 = arith.addf %92, %93 : vector<8x32xf32>
    %cst_31 = arith.constant 0.000000e+00 : f32
    %95 = vector.broadcast %cst_31 : f32 to vector<8x32xf32>
    %96 = arith.maximumf %94, %95 : vector<8x32xf32>
    %cst_32 = arith.constant dense<0.000000e+00> : vector<8x128xf32>
    %97 = tpu.matmul %96, %3, %cst_32 {dimension_numbers = #tpu.dot_dimension_numbers<[1], [0], [0], [1], [0, 0, 1, 1], [], []>} : vector<8x32xf32>, vector<32x128xf32>, vector<8x128xf32> -> vector<8x128xf32>
    %98 = vector.broadcast %5 : vector<1x128xf32> to vector<8x128xf32>
    %99 = arith.addf %97, %98 : vector<8x128xf32>
    %c0_33 = arith.constant 0 : index
    %c0_34 = arith.constant 0 : index
    %100 = vector.load %arg3[%c0_33, %c0_34] : memref<8x128xf32, #tpu.memory_space<vmem>>, vector<8x128xf32>
    tpu.vector_store %arg3[%c0_33, %c0_34], %99 {strides = array<i32>} : memref<8x128xf32, #tpu.memory_space<vmem>>, vector<8x128xf32>,
    return
  }
  func.func @transform_0(%arg0: i32) -> (i32, i32) {
    %c0_i32 = arith.constant 0 : i32
    %c0_i32_0 = arith.constant 0 : i32
    return %arg0, %c0_i32 : i32, i32
  }
  func.func @transform_1(%arg0: i32) -> (i32, i32) {
    %c0_i32 = arith.constant 0 : i32
    %c0_i32_0 = arith.constant 0 : i32
    %c0_i32_1 = arith.constant 0 : i32
    return %c0_i32, %c0_i32_0 : i32, i32
  }
  func.func @transform_2(%arg0: i32) -> (i32, i32) {
    %c0_i32 = arith.constant 0 : i32
    %c0_i32_0 = arith.constant 0 : i32
    return %arg0, %c0_i32 : i32, i32
  }
}

</mosaic_0001>

<llo_original>
// kernel: tpu_custom_call.1
$region0: #{tpu_custom_call.1}
  #allocation0 [shape = 'u32[]', space=smem, size = 0x4, offset = 0x4, fixed_abs, tag = 'smem constant byte address 0x4 - core index']
  #allocation1 [shape = 'u32[72,128]{1,0:T(1,128)}', space=vmem, size = 0x9000, scoped, tag = 'internal scratch']
  %s0 = inlined_call_operand.hbm [shape: f32[8,16], index: 0, kind: input, shape index: {}]
  %s1 = inlined_call_operand.hbm [shape: f32[424,384], index: 1, kind: input, shape index: {}]
  %s2 = inlined_call_operand.hbm [shape: f32[8,128], index: 2, kind: output, shape index: {}]
  %s3 = sld [smem:[#allocation0]]
  $region26: #{tpu_custom_call.1} parent=0
    _
  %s5 = ssub.s32 1, %s3
  %s6 = scalar_select 0, %s5, %s3
  $region1: #{tpu_custom_call.1} parent=0
    #allocation2 [shape = 'u8[4096]{0}', space=vmem, size = 0x1000, scoped, tag = 'input window, operand 0, single buffered']
    #allocation3 [shape = 's32[1]{0}', space=sflag, size = 0x4, scoped, tag = 'scoped memory for tpu_custom_call.1']
    #allocation4 [shape = 's32[1]{0}', space=sflag, size = 0x4, scoped, tag = 'scoped memory for tpu_custom_call.1']
    #allocation5 [shape = 'u8[651264]{0}', space=vmem, size = 0x9f000, scoped, tag = 'input window, operand 1, single buffered']
    #allocation6 [shape = 's32[1]{0}', space=sflag, size = 0x4, scoped, tag = 'scoped memory for tpu_custom_call.1']
    #allocation7 [shape = 'u8[4096]{0}', space=vmem, size = 0x1000, scoped, tag = 'output window, operand 0, single buffered']
    %7 = vsyncpa [#allocation3], 0
    %8 = vsyncpa [#allocation6], 0
    %9 = vsyncpa [#allocation4], 0
    // Predicated region
    $region2: #{tpu_custom_call.1} parent=1 // pred_check
      _
    $region3: #{tpu_custom_call.1} parent=1 // pred_check_branch
      %11 = sbr.rel (0) target = $region5
    $region4: #{tpu_custom_call.1} parent=1 // pred_region
      %13 = vsyncadd [#allocation3], 0
      %s15 = sshll.u32 %s0, 4
      %s16 = int_to_ptr.hbm [resolvable:$true] %s15
      %s17 = sshll.u32 [#allocation2], 4
      %s18 = int_to_ptr.vmem [resolvable:$true] %s17
      %20 = dma.hbm_to_vmem [thread:$0]  %s16, 128, %s18, [#allocation3]
    $region5: #{tpu_custom_call.1} parent=1 // pred_fallthru
      _
    // Predicated region
    $region6: #{tpu_custom_call.1} parent=1 // pred_check
      _
    $region7: #{tpu_custom_call.1} parent=1 // pred_check_branch
      %22 = sbr.rel (0) target = $region9
    $region8: #{tpu_custom_call.1} parent=1 // pred_region
      %24 = vsyncadd [#allocation6], 0
      %s25 = sshll.u32 %s1, 4
      %s26 = int_to_ptr.hbm [resolvable:$true] %s25
      %s27 = sshll.u32 [#allocation5], 4
      %s28 = int_to_ptr.vmem [resolvable:$true] %s27
      %33 = dma.hbm_to_vmem [thread:$0]  %s26, 20352, %s28, [#allocation6], 384, 384, 24
    $region9: #{tpu_custom_call.1} parent=1 // pred_fallthru
      _
    // Predicated region
    $region10: #{tpu_custom_call.1} parent=1 // pred_check
      _
    $region11: #{tpu_custom_call.1} parent=1 // pred_check_branch
      %35 = sbr.rel (0) target = $region13
    $region12: #{tpu_custom_call.1} parent=1 // pred_region
      %37 = dma.done [#allocation3], 128
    $region13: #{tpu_custom_call.1} parent=1 // pred_fallthru
      _
    // Predicated region
    $region14: #{tpu_custom_call.1} parent=1 // pred_check
      _
    $region15: #{tpu_custom_call.1} parent=1 // pred_check_branch
      %39 = sbr.rel (0) target = $region17
    $region16: #{tpu_custom_call.1} parent=1 // pred_region
      %41 = dma.done [#allocation6], 20352
    $region17: #{tpu_custom_call.1} parent=1 // pred_fallthru
      _
    %v42 = vld [vmem:[#allocation5 + $0x2a0] sm:$0xff]
    %v43 = vld [vmem:[#allocation5 + $0x2b8] sm:$0xff]
    %v44 = vld [vmem:[#allocation5 + $0x2d0] sm:$0xff]
    %v45 = vld [vmem:[#allocation5 + $0x2e8] sm:$0xff]
    %v46 = vld [vmem:[#allocation5 + $0x300] sm:$0xff]
    %v47 = vld [vmem:[#allocation5 + $0x318] sm:$0xff]
    %v48 = vld [vmem:[#allocation5 + $0x330] sm:$0xff]
    %v49 = vld [vmem:[#allocation5 + $0x348] sm:$0xff]
    %v50 = vld [vmem:[#allocation5 + $0x360] sm:$0xff]
    %v51 = vld [vmem:[#allocation5 + $0x378] sm:$0xff]
    %v52 = vld [vmem:[#allocation5 + $0x390] sm:$0xff]
    %v53 = vld [vmem:[#allocation5 + $0x3a8] sm:$0xff]
    %v54 = vld [vmem:[#allocation5 + $0x3c0] sm:$0xff]
    %v55 = vld [vmem:[#allocation5 + $0x3d8] sm:$0xff]
    %v56 = vld [vmem:[#allocation5 + $0x3f0] sm:$0xff]
    %v57 = vld [vmem:[#allocation5 + $0x408] sm:$0xff]
    %v58 = vld [vmem:[#allocation5 + $0x420] sm:$0xff]
    %v59 = vld [vmem:[#allocation5 + $0x428] sm:$0xff]
    %v60 = vld [vmem:[#allocation5 + $0x438] sm:$0xff]
    %v61 = vld [vmem:[#allocation5 + $0x440] sm:$0xff]
    %v62 = vld [vmem:[#allocation5 + $0x450] sm:$0xff]
    %v63 = vld [vmem:[#allocation5 + $0x468] sm:$0xff]
    %v64 = vld [vmem:[#allocation5 + $0x480] sm:$0xff]
    %v65 = vld [vmem:[#allocation5 + $0x498] sm:$0xff]
    %v66 = vld [vmem:[#allocation5 + $0x4b0] sm:$0xff]
    %v67 = vld [vmem:[#allocation5 + $0x4c8] sm:$0xff]
    %v68 = vld [vmem:[#allocation5 + $0x4e0] sm:$0xff]
    %v69 = vperm.slane %v68, 2
    %v70 = vld [vmem:[#allocation2] sm:$0xff]
    %v71 = vperm.slane %v68, 1
    %vm72 = vcmask 130048
    %v74 = vsel %vm72, %v70, 0
    %76 = vmatpush.msra.mxu0 0.0
    %77 = vmatpush.msra.mxu0 0.0
    %78 = vmatpush.msra.mxu0 0.0
    %79 = vmatpush.msra.mxu0 0.0
    %80 = vmatpush.msra.mxu0 0.0
    %81 = vmatpush.msra.mxu0 0.0
    %82 = vmatpush.msra.mxu0 0.0
    %83 = vmatpush.msra.mxu0 0.0
    %84 = vmatpush.msra.mxu0 0.0
    %85 = vmatpush.msra.mxu0 0.0
    %86 = vmatpush.msra.mxu0 0.0
    %87 = vmatpush.msra.mxu0 0.0
    %88 = vmatpush.msra.mxu0 0.0
    %89 = vmatpush.msra.mxu0 0.0
    %90 = vmatpush.msra.mxu0 %v63
    %91 = vmatpush.msra.mxu0 %v62
    %92 = vmatmul.f32.gmra.mxu0 %v74
    %v93 = vpop.f32.mrf.mxu0
    %v94 = vadd.f32 %v71, %v93
    %95 = vdwg.mxu0
    %v96 = vmax.f32 %v94, 0.0
    %v97 = vld [vmem:[#allocation5] sm:$0xff]
    %v98 = vld [vmem:[#allocation5 + $0x8] sm:$0xff]
    %v99 = vld [vmem:[#allocation5 + $0x10] sm:$0xff]
    %v100 = vld [vmem:[#allocation5 + $0x18] sm:$0xff]
    %v101 = vld [vmem:[#allocation5 + $0x20] sm:$0xff]
    %v102 = vld [vmem:[#allocation5 + $0x28] sm:$0xff]
    %v103 = vld [vmem:[#allocation5 + $0x30] sm:$0xff]
    %v104 = vld [vmem:[#allocation5 + $0x38] sm:$0xff]
    %v105 = vld [vmem:[#allocation5 + $0x40] sm:$0xff]
    %v106 = vld [vmem:[#allocation5 + $0x48] sm:$0xff]
    %v107 = vld [vmem:[#allocation5 + $0x50] sm:$0xff]
    %v108 = vld [vmem:[#allocation5 + $0x58] sm:$0xff]
    %v109 = vld [vmem:[#allocation5 + $0x120] sm:$0xff]
    %v110 = vld [vmem:[#allocation5 + $0x138] sm:$0xff]
    %v111 = vld [vmem:[#allocation5 + $0x150] sm:$0xff]
    %v112 = vld [vmem:[#allocation5 + $0x168] sm:$0xff]
    %v113 = vld [vmem:[#allocation5 + $0x180] sm:$0xff]
    %v114 = vld [vmem:[#allocation5 + $0x198] sm:$0xff]
    %v115 = vld [vmem:[#allocation5 + $0x1b0] sm:$0xff]
    %v116 = vld [vmem:[#allocation5 + $0x1c8] sm:$0xff]
    %v117 = vld [vmem:[#allocation5 + $0x1e0] sm:$0xff]
    %v118 = vld [vmem:[#allocation5 + $0x1f8] sm:$0xff]
    %v119 = vld [vmem:[#allocation5 + $0x210] sm:$0xff]
    %v120 = vld [vmem:[#allocation5 + $0x228] sm:$0xff]
    %v121 = vld [vmem:[#allocation5 + $0x240] sm:$0xff]
    %v122 = vld [vmem:[#allocation5 + $0x258] sm:$0xff]
    %v123 = vld [vmem:[#allocation5 + $0x270] sm:$0xff]
    %v124 = vld [vmem:[#allocation5 + $0x288] sm:$0xff]
    %vm125 = vcmask 261120
    %v127 = vsel %vm125, %v96, 0
    %129 = vmatpush.msra.mxu0 0.0
    %130 = vmatpush.msra.mxu0 0.0
    %131 = vmatpush.msra.mxu0 0.0
    %132 = vmatpush.msra.mxu0 0.0
    %133 = vmatpush.msra.mxu0 0.0
    %134 = vmatpush.msra.mxu0 0.0
    %135 = vmatpush.msra.mxu0 0.0
    %136 = vmatpush.msra.mxu0 0.0
    %137 = vmatpush.msra.mxu0 0.0
    %138 = vmatpush.msra.mxu0 0.0
    %139 = vmatpush.msra.mxu0 0.0
    %140 = vmatpush.msra.mxu0 0.0
    %141 = vmatpush.msra.mxu0 %v106
    %142 = vmatpush.msra.mxu0 %v103
    %143 = vmatpush.msra.mxu0 %v100
    %144 = vmatpush.msra.mxu0 %v97
    %145 = vmatmul.f32.gmra.mxu0 %v127
    %v146 = vpop.f32.mrf.mxu0
    %v147 = vadd.f32 0.0, %v146
    %148 = vdwg.mxu0
    %149 = vmatpush.msra.mxu0 0.0
    %150 = vmatpush.msra.mxu0 0.0
    %151 = vmatpush.msra.mxu0 0.0
    %152 = vmatpush.msra.mxu0 0.0
    %153 = vmatpush.msra.mxu0 0.0
    %154 = vmatpush.msra.mxu0 0.0
    %155 = vmatpush.msra.mxu0 0.0
    %156 = vmatpush.msra.mxu0 0.0
    %157 = vmatpush.msra.mxu0 0.0
    %158 = vmatpush.msra.mxu0 0.0
    %159 = vmatpush.msra.mxu0 0.0
    %160 = vmatpush.msra.mxu0 0.0
    %161 = vmatpush.msra.mxu0 %v107
    %162 = vmatpush.msra.mxu0 %v104
    %163 = vmatpush.msra.mxu0 %v101
    %164 = vmatpush.msra.mxu0 %v98
    %165 = vmatmul.f32.gmra.mxu0 %v127
    %v166 = vpop.f32.mrf.mxu0
    %v167 = vadd.f32 0.0, %v166
    %168 = vdwg.mxu0
    %169 = vmatpush.msra.mxu0 0.0
    %170 = vmatpush.msra.mxu0 0.0
    %171 = vmatpush.msra.mxu0 0.0
    %172 = vmatpush.msra.mxu0 0.0
    %173 = vmatpush.msra.mxu0 0.0
    %174 = vmatpush.msra.mxu0 0.0
    %175 = vmatpush.msra.mxu0 0.0
    %176 = vmatpush.msra.mxu0 0.0
    %177 = vmatpush.msra.mxu0 0.0
    %178 = vmatpush.msra.mxu0 0.0
    %179 = vmatpush.msra.mxu0 0.0
    %180 = vmatpush.msra.mxu0 0.0
    %181 = vmatpush.msra.mxu0 %v108
    %182 = vmatpush.msra.mxu0 %v105
    %183 = vmatpush.msra.mxu0 %v102
    %184 = vmatpush.msra.mxu0 %v99
    %185 = vmatmul.f32.gmra.mxu0 %v127
    %v186 = vpop.f32.mrf.mxu0
    %v187 = vadd.f32 0.0, %v186
    %188 = vdwg.mxu0
    %v189 = vmul.f32 %v147, %v167
    %190 = vmatpush.msra.mxu0 %v57
    %191 = vmatpush.msra.mxu0 %v56
    %192 = vmatpush.msra.mxu0 %v55
    %193 = vmatpush.msra.mxu0 %v54
    %194 = vmatpush.msra.mxu0 %v53
    %195 = vmatpush.msra.mxu0 %v52
    %196 = vmatpush.msra.mxu0 %v51
    %197 = vmatpush.msra.mxu0 %v50
    %198 = vmatpush.msra.mxu0 %v49
    %199 = vmatpush.msra.mxu0 %v48
    %200 = vmatpush.msra.mxu0 %v47
    %201 = vmatpush.msra.mxu0 %v46
    %202 = vmatpush.msra.mxu0 %v45
    %203 = vmatpush.msra.mxu0 %v44
    %204 = vmatpush.msra.mxu0 %v43
    %205 = vmatpush.msra.mxu0 %v42
    %206 = vmatmul.f32.gmra.mxu0 %v189
    %v207 = vpop.f32.mrf.mxu0
    %v208 = vadd.f32 0.0, %v207
    %209 = vdwg.mxu0
    %v210 = vsel %vm72, %v208, -inf
    %211 = vmax.xlane.f32.xlu0 %v210
    %v212 = vpop.xlane.xlu0 %211
    %v213 = vsub.f32 %v208, %v212
    %v214 = vmul.f32 %v213, 1.442695
    %v215 = vpow.pop %v214
    %v217 = vsel %vm72, %v215, 0
    %219 = vmatpush.msra.mxu0 0.0
    %220 = vmatpush.msra.mxu0 0.0
    %221 = vmatpush.msra.mxu0 0.0
    %222 = vmatpush.msra.mxu0 0.0
    %223 = vmatpush.msra.mxu0 0.0
    %224 = vmatpush.msra.mxu0 0.0
    %225 = vmatpush.msra.mxu0 0.0
    %226 = vmatpush.msra.mxu0 0.0
    %227 = vmatpush.msra.mxu0 0.0
    %228 = vmatpush.msra.mxu0 0.0
    %229 = vmatpush.msra.mxu0 0.0
    %230 = vmatpush.msra.mxu0 0.0
    %231 = vmatpush.msra.mxu0 0.0
    %232 = vmatpush.msra.mxu0 0.0
    %233 = vmatpush.msra.mxu0 %v60
    %234 = vmatpush.msra.mxu0 %v58
    %235 = vmatmul.f32.gmra.mxu0 %v217
    %v236 = vpop.f32.mrf.mxu0
    %v237 = vadd.f32 0.0, %v236
    %238 = vdwg.mxu0
    %239 = vmatpush.msra.mxu0 0.0
    %240 = vmatpush.msra.mxu0 0.0
    %241 = vmatpush.msra.mxu0 0.0
    %242 = vmatpush.msra.mxu0 0.0
    %243 = vmatpush.msra.mxu0 0.0
    %244 = vmatpush.msra.mxu0 0.0
    %245 = vmatpush.msra.mxu0 0.0
    %246 = vmatpush.msra.mxu0 0.0
    %247 = vmatpush.msra.mxu0 0.0
    %248 = vmatpush.msra.mxu0 0.0
    %249 = vmatpush.msra.mxu0 0.0
    %250 = vmatpush.msra.mxu0 0.0
    %251 = vmatpush.msra.mxu0 0.0
    %252 = vmatpush.msra.mxu0 0.0
    %253 = vmatpush.msra.mxu0 %v61
    %254 = vmatpush.msra.mxu0 %v59
    %255 = vmatmul.f32.gmra.mxu0 %v217
    %v256 = vpop.f32.mrf.mxu0
    %v257 = vadd.f32 0.0, %v256
    %258 = vdwg.mxu0
    %v259 = vrcp.pop %v257
    %v260 = vmul.f32 %v257, %v259
    %v261 = vsub.f32 1.0, %v260
    %v262 = vmul.f32 %v259, %v261
    %v263 = vadd.f32 %v259, %v262
    %vm264 = vweird.f32 %v257
    %vm265 = vweird.f32 %v259
    %vm266 = vmor %vm264, %vm265
    %v267 = vsel %vm266, %v259, %v263
    %v268 = vand.u32 2147483647, %v257
    %vm269 = vcmp.eq.f32.partialorder %v268, 8.507059e+37
    %v270 = vand.u32 %v257, 2147483648
    %v271 = vor.u32 1.1754944e-38, %v270
    %v272 = vsel %vm269, %v271, %v267
    %v273 = vmul.f32 %v237, %v272
    %v274 = vmul.f32 %v273, %v187
    %275 = vmatpush.msra.mxu0 %v124
    %276 = vmatpush.msra.mxu0 %v123
    %277 = vmatpush.msra.mxu0 %v122
    %278 = vmatpush.msra.mxu0 %v121
    %279 = vmatpush.msra.mxu0 %v120
    %280 = vmatpush.msra.mxu0 %v119
    %281 = vmatpush.msra.mxu0 %v118
    %282 = vmatpush.msra.mxu0 %v117
    %283 = vmatpush.msra.mxu0 %v116
    %284 = vmatpush.msra.mxu0 %v115
    %285 = vmatpush.msra.mxu0 %v114
    %286 = vmatpush.msra.mxu0 %v113
    %287 = vmatpush.msra.mxu0 %v112
    %288 = vmatpush.msra.mxu0 %v111
    %289 = vmatpush.msra.mxu0 %v110
    %290 = vmatpush.msra.mxu0 %v109
    %291 = vmatmul.f32.gmra.mxu0 %v274
    %v292 = vpop.f32.mrf.mxu0
    %v293 = vadd.f32 %v96, %v292
    %294 = vdwg.mxu0
    %v295 = vmul.f32 %v293, %v69
    %v296 = vperm.slane %v68, 3
    %v297 = vadd.f32 %v295, %v296
    %v298 = vmax.f32 %v297, 0.0
    %v299 = vld [vmem:[#allocation5 + $0x60] sm:$0xff]
    %v300 = vld [vmem:[#allocation5 + $0x68] sm:$0xff]
    %v301 = vld [vmem:[#allocation5 + $0x70] sm:$0xff]
    %v302 = vld [vmem:[#allocation5 + $0x78] sm:$0xff]
    %v303 = vld [vmem:[#allocation5 + $0x80] sm:$0xff]
    %v304 = vld [vmem:[#allocation5 + $0x88] sm:$0xff]
    %v305 = vld [vmem:[#allocation5 + $0x90] sm:$0xff]
    %v306 = vld [vmem:[#allocation5 + $0x98] sm:$0xff]
    %v307 = vld [vmem:[#allocation5 + $0xa0] sm:$0xff]
    %v308 = vld [vmem:[#allocation5 + $0xa8] sm:$0xff]
    %v309 = vld [vmem:[#allocation5 + $0xb0] sm:$0xff]
    %v310 = vld [vmem:[#allocation5 + $0xb8] sm:$0xff]
    %v311 = vld [vmem:[#allocation5 + $0x128] sm:$0xff]
    %v312 = vld [vmem:[#allocation5 + $0x140] sm:$0xff]
    %v313 = vld [vmem:[#allocation5 + $0x158] sm:$0xff]
    %v314 = vld [vmem:[#allocation5 + $0x170] sm:$0xff]
    %v315 = vld [vmem:[#allocation5 + $0x188] sm:$0xff]
    %v316 = vld [vmem:[#allocation5 + $0x1a0] sm:$0xff]
    %v317 = vld [vmem:[#allocation5 + $0x1b8] sm:$0xff]
    %v318 = vld [vmem:[#allocation5 + $0x1d0] sm:$0xff]
    %v319 = vld [vmem:[#allocation5 + $0x1e8] sm:$0xff]
    %v320 = vld [vmem:[#allocation5 + $0x200] sm:$0xff]
    %v321 = vld [vmem:[#allocation5 + $0x218] sm:$0xff]
    %v322 = vld [vmem:[#allocation5 + $0x230] sm:$0xff]
    %v323 = vld [vmem:[#allocation5 + $0x248] sm:$0xff]
    %v324 = vld [vmem:[#allocation5 + $0x260] sm:$0xff]
    %v325 = vld [vmem:[#allocation5 + $0x278] sm:$0xff]
    %v326 = vld [vmem:[#allocation5 + $0x290] sm:$0xff]
    %v328 = vsel %vm125, %v298, 0
    %330 = vmatpush.msra.mxu0 0.0
    %331 = vmatpush.msra.mxu0 0.0
    %332 = vmatpush.msra.mxu0 0.0
    %333 = vmatpush.msra.mxu0 0.0
    %334 = vmatpush.msra.mxu0 0.0
    %335 = vmatpush.msra.mxu0 0.0
    %336 = vmatpush.msra.mxu0 0.0
    %337 = vmatpush.msra.mxu0 0.0
    %338 = vmatpush.msra.mxu0 0.0
    %339 = vmatpush.msra.mxu0 0.0
    %340 = vmatpush.msra.mxu0 0.0
    %341 = vmatpush.msra.mxu0 0.0
    %342 = vmatpush.msra.mxu0 %v308
    %343 = vmatpush.msra.mxu0 %v305
    %344 = vmatpush.msra.mxu0 %v302
    %345 = vmatpush.msra.mxu0 %v299
    %346 = vmatmul.f32.gmra.mxu0 %v328
    %v347 = vpop.f32.mrf.mxu0
    %v348 = vadd.f32 0.0, %v347
    %349 = vdwg.mxu0
    %350 = vmatpush.msra.mxu0 0.0
    %351 = vmatpush.msra.mxu0 0.0
    %352 = vmatpush.msra.mxu0 0.0
    %353 = vmatpush.msra.mxu0 0.0
    %354 = vmatpush.msra.mxu0 0.0
    %355 = vmatpush.msra.mxu0 0.0
    %356 = vmatpush.msra.mxu0 0.0
    %357 = vmatpush.msra.mxu0 0.0
    %358 = vmatpush.msra.mxu0 0.0
    %359 = vmatpush.msra.mxu0 0.0
    %360 = vmatpush.msra.mxu0 0.0
    %361 = vmatpush.msra.mxu0 0.0
    %362 = vmatpush.msra.mxu0 %v309
    %363 = vmatpush.msra.mxu0 %v306
    %364 = vmatpush.msra.mxu0 %v303
    %365 = vmatpush.msra.mxu0 %v300
    %366 = vmatmul.f32.gmra.mxu0 %v328
    %v367 = vpop.f32.mrf.mxu0
    %v368 = vadd.f32 0.0, %v367
    %369 = vdwg.mxu0
    %370 = vmatpush.msra.mxu0 0.0
    %371 = vmatpush.msra.mxu0 0.0
    %372 = vmatpush.msra.mxu0 0.0
    %373 = vmatpush.msra.mxu0 0.0
    %374 = vmatpush.msra.mxu0 0.0
    %375 = vmatpush.msra.mxu0 0.0
    %376 = vmatpush.msra.mxu0 0.0
    %377 = vmatpush.msra.mxu0 0.0
    %378 = vmatpush.msra.mxu0 0.0
    %379 = vmatpush.msra.mxu0 0.0
    %380 = vmatpush.msra.mxu0 0.0
    %381 = vmatpush.msra.mxu0 0.0
    %382 = vmatpush.msra.mxu0 %v310
    %383 = vmatpush.msra.mxu0 %v307
    %384 = vmatpush.msra.mxu0 %v304
    %385 = vmatpush.msra.mxu0 %v301
    %386 = vmatmul.f32.gmra.mxu0 %v328
    %v387 = vpop.f32.mrf.mxu0
    %v388 = vadd.f32 0.0, %v387
    %389 = vdwg.mxu0
    %v390 = vmul.f32 %v348, %v368
    %391 = vmatpush.msra.mxu0 %v57
    %392 = vmatpush.msra.mxu0 %v56
    %393 = vmatpush.msra.mxu0 %v55
    %394 = vmatpush.msra.mxu0 %v54
    %395 = vmatpush.msra.mxu0 %v53
    %396 = vmatpush.msra.mxu0 %v52
    %397 = vmatpush.msra.mxu0 %v51
    %398 = vmatpush.msra.mxu0 %v50
    %399 = vmatpush.msra.mxu0 %v49
    %400 = vmatpush.msra.mxu0 %v48
    %401 = vmatpush.msra.mxu0 %v47
    %402 = vmatpush.msra.mxu0 %v46
    %403 = vmatpush.msra.mxu0 %v45
    %404 = vmatpush.msra.mxu0 %v44
    %405 = vmatpush.msra.mxu0 %v43
    %406 = vmatpush.msra.mxu0 %v42
    %407 = vmatmul.f32.gmra.mxu0 %v390
    %v408 = vpop.f32.mrf.mxu0
    %v409 = vadd.f32 0.0, %v408
    %410 = vdwg.mxu0
    %v411 = vsel %vm72, %v409, -inf
    %412 = vmax.xlane.f32.xlu0 %v411
    %v413 = vpop.xlane.xlu0 %412
    %v414 = vsub.f32 %v409, %v413
    %v415 = vmul.f32 %v414, 1.442695
    %v416 = vpow.pop %v415
    %v418 = vsel %vm72, %v416, 0
    %420 = vmatpush.msra.mxu0 0.0
    %421 = vmatpush.msra.mxu0 0.0
    %422 = vmatpush.msra.mxu0 0.0
    %423 = vmatpush.msra.mxu0 0.0
    %424 = vmatpush.msra.mxu0 0.0
    %425 = vmatpush.msra.mxu0 0.0
    %426 = vmatpush.msra.mxu0 0.0
    %427 = vmatpush.msra.mxu0 0.0
    %428 = vmatpush.msra.mxu0 0.0
    %429 = vmatpush.msra.mxu0 0.0
    %430 = vmatpush.msra.mxu0 0.0
    %431 = vmatpush.msra.mxu0 0.0
    %432 = vmatpush.msra.mxu0 0.0
    %433 = vmatpush.msra.mxu0 0.0
    %434 = vmatpush.msra.mxu0 %v60
    %435 = vmatpush.msra.mxu0 %v58
    %436 = vmatmul.f32.gmra.mxu0 %v418
    %v437 = vpop.f32.mrf.mxu0
    %v438 = vadd.f32 0.0, %v437
    %439 = vdwg.mxu0
    %440 = vmatpush.msra.mxu0 0.0
    %441 = vmatpush.msra.mxu0 0.0
    %442 = vmatpush.msra.mxu0 0.0
    %443 = vmatpush.msra.mxu0 0.0
    %444 = vmatpush.msra.mxu0 0.0
    %445 = vmatpush.msra.mxu0 0.0
    %446 = vmatpush.msra.mxu0 0.0
    %447 = vmatpush.msra.mxu0 0.0
    %448 = vmatpush.msra.mxu0 0.0
    %449 = vmatpush.msra.mxu0 0.0
    %450 = vmatpush.msra.mxu0 0.0
    %451 = vmatpush.msra.mxu0 0.0
    %452 = vmatpush.msra.mxu0 0.0
    %453 = vmatpush.msra.mxu0 0.0
    %454 = vmatpush.msra.mxu0 %v61
    %455 = vmatpush.msra.mxu0 %v59
    %456 = vmatmul.f32.gmra.mxu0 %v418
    %v457 = vpop.f32.mrf.mxu0
    %v458 = vadd.f32 0.0, %v457
    %459 = vdwg.mxu0
    %v460 = vrcp.pop %v458
    %v461 = vmul.f32 %v458, %v460
    %v462 = vsub.f32 1.0, %v461
    %v463 = vmul.f32 %v460, %v462
    %v464 = vadd.f32 %v460, %v463
    %vm465 = vweird.f32 %v458
    %vm466 = vweird.f32 %v460
    %vm467 = vmor %vm465, %vm466
    %v468 = vsel %vm467, %v460, %v464
    %v469 = vand.u32 2147483647, %v458
    %vm470 = vcmp.eq.f32.partialorder %v469, 8.507059e+37
    %v471 = vand.u32 %v458, 2147483648
    %v472 = vor.u32 1.1754944e-38, %v471
    %v473 = vsel %vm470, %v472, %v468
    %v474 = vmul.f32 %v438, %v473
    %v475 = vmul.f32 %v474, %v388
    %476 = vmatpush.msra.mxu0 %v326
    %477 = vmatpush.msra.mxu0 %v325
    %478 = vmatpush.msra.mxu0 %v324
    %479 = vmatpush.msra.mxu0 %v323
    %480 = vmatpush.msra.mxu0 %v322
    %481 = vmatpush.msra.mxu0 %v321
    %482 = vmatpush.msra.mxu0 %v320
    %483 = vmatpush.msra.mxu0 %v319
    %484 = vmatpush.msra.mxu0 %v318
    %485 = vmatpush.msra.mxu0 %v317
    %486 = vmatpush.msra.mxu0 %v316
    %487 = vmatpush.msra.mxu0 %v315
    %488 = vmatpush.msra.mxu0 %v314
    %489 = vmatpush.msra.mxu0 %v313
    %490 = vmatpush.msra.mxu0 %v312
    %491 = vmatpush.msra.mxu0 %v311
    %492 = vmatmul.f32.gmra.mxu0 %v475
    %v493 = vpop.f32.mrf.mxu0
    %v494 = vadd.f32 %v298, %v493
    %495 = vdwg.mxu0
    %v496 = vmul.f32 %v494, %v69
    %v497 = vperm.slane %v68, 4
    %v498 = vadd.f32 %v496, %v497
    %v499 = vmax.f32 %v498, 0.0
    %v500 = vld [vmem:[#allocation5 + $0xc0] sm:$0xff]
    %v501 = vld [vmem:[#allocation5 + $0xc8] sm:$0xff]
    %v502 = vld [vmem:[#allocation5 + $0xd0] sm:$0xff]
    %v503 = vld [vmem:[#allocation5 + $0xd8] sm:$0xff]
    %v504 = vld [vmem:[#allocation5 + $0xe0] sm:$0xff]
    %v505 = vld [vmem:[#allocation5 + $0xe8] sm:$0xff]
    %v506 = vld [vmem:[#allocation5 + $0xf0] sm:$0xff]
    %v507 = vld [vmem:[#allocation5 + $0xf8] sm:$0xff]
    %v508 = vld [vmem:[#allocation5 + $0x100] sm:$0xff]
    %v509 = vld [vmem:[#allocation5 + $0x108] sm:$0xff]
    %v510 = vld [vmem:[#allocation5 + $0x110] sm:$0xff]
    %v511 = vld [vmem:[#allocation5 + $0x118] sm:$0xff]
    %v512 = vld [vmem:[#allocation5 + $0x130] sm:$0xff]
    %v513 = vld [vmem:[#allocation5 + $0x148] sm:$0xff]
    %v514 = vld [vmem:[#allocation5 + $0x160] sm:$0xff]
    %v515 = vld [vmem:[#allocation5 + $0x178] sm:$0xff]
    %v516 = vld [vmem:[#allocation5 + $0x190] sm:$0xff]
    %v517 = vld [vmem:[#allocation5 + $0x1a8] sm:$0xff]
    %v518 = vld [vmem:[#allocation5 + $0x1c0] sm:$0xff]
    %v519 = vld [vmem:[#allocation5 + $0x1d8] sm:$0xff]
    %v520 = vld [vmem:[#allocation5 + $0x1f0] sm:$0xff]
    %v521 = vld [vmem:[#allocation5 + $0x208] sm:$0xff]
    %v522 = vld [vmem:[#allocation5 + $0x220] sm:$0xff]
    %v523 = vld [vmem:[#allocation5 + $0x238] sm:$0xff]
    %v524 = vld [vmem:[#allocation5 + $0x250] sm:$0xff]
    %v525 = vld [vmem:[#allocation5 + $0x268] sm:$0xff]
    %v526 = vld [vmem:[#allocation5 + $0x280] sm:$0xff]
    %v527 = vld [vmem:[#allocation5 + $0x298] sm:$0xff]
    %v529 = vsel %vm125, %v499, 0
    %531 = vmatpush.msra.mxu0 0.0
    %532 = vmatpush.msra.mxu0 0.0
    %533 = vmatpush.msra.mxu0 0.0
    %534 = vmatpush.msra.mxu0 0.0
    %535 = vmatpush.msra.mxu0 0.0
    %536 = vmatpush.msra.mxu0 0.0
    %537 = vmatpush.msra.mxu0 0.0
    %538 = vmatpush.msra.mxu0 0.0
    %539 = vmatpush.msra.mxu0 0.0
    %540 = vmatpush.msra.mxu0 0.0
    %541 = vmatpush.msra.mxu0 0.0
    %542 = vmatpush.msra.mxu0 0.0
    %543 = vmatpush.msra.mxu0 %v509
    %544 = vmatpush.msra.mxu0 %v506
    %545 = vmatpush.msra.mxu0 %v503
    %546 = vmatpush.msra.mxu0 %v500
    %547 = vmatmul.f32.gmra.mxu0 %v529
    %v548 = vpop.f32.mrf.mxu0
    %v549 = vadd.f32 0.0, %v548
    %550 = vdwg.mxu0
    %551 = vmatpush.msra.mxu0 0.0
    %552 = vmatpush.msra.mxu0 0.0
    %553 = vmatpush.msra.mxu0 0.0
    %554 = vmatpush.msra.mxu0 0.0
    %555 = vmatpush.msra.mxu0 0.0
    %556 = vmatpush.msra.mxu0 0.0
    %557 = vmatpush.msra.mxu0 0.0
    %558 = vmatpush.msra.mxu0 0.0
    %559 = vmatpush.msra.mxu0 0.0
    %560 = vmatpush.msra.mxu0 0.0
    %561 = vmatpush.msra.mxu0 0.0
    %562 = vmatpush.msra.mxu0 0.0
    %563 = vmatpush.msra.mxu0 %v510
    %564 = vmatpush.msra.mxu0 %v507
    %565 = vmatpush.msra.mxu0 %v504
    %566 = vmatpush.msra.mxu0 %v501
    %567 = vmatmul.f32.gmra.mxu0 %v529
    %v568 = vpop.f32.mrf.mxu0
    %v569 = vadd.f32 0.0, %v568
    %570 = vdwg.mxu0
    %571 = vmatpush.msra.mxu0 0.0
    %572 = vmatpush.msra.mxu0 0.0
    %573 = vmatpush.msra.mxu0 0.0
    %574 = vmatpush.msra.mxu0 0.0
    %575 = vmatpush.msra.mxu0 0.0
    %576 = vmatpush.msra.mxu0 0.0
    %577 = vmatpush.msra.mxu0 0.0
    %578 = vmatpush.msra.mxu0 0.0
    %579 = vmatpush.msra.mxu0 0.0
    %580 = vmatpush.msra.mxu0 0.0
    %581 = vmatpush.msra.mxu0 0.0
    %582 = vmatpush.msra.mxu0 0.0
    %583 = vmatpush.msra.mxu0 %v511
    %584 = vmatpush.msra.mxu0 %v508
    %585 = vmatpush.msra.mxu0 %v505
    %586 = vmatpush.msra.mxu0 %v502
    %587 = vmatmul.f32.gmra.mxu0 %v529
    %v588 = vpop.f32.mrf.mxu0
    %v589 = vadd.f32 0.0, %v588
    %590 = vdwg.mxu0
    %v591 = vmul.f32 %v549, %v569
    %592 = vmatpush.msra.mxu0 %v57
    %593 = vmatpush.msra.mxu0 %v56
    %594 = vmatpush.msra.mxu0 %v55
    %595 = vmatpush.msra.mxu0 %v54
    %596 = vmatpush.msra.mxu0 %v53
    %597 = vmatpush.msra.mxu0 %v52
    %598 = vmatpush.msra.mxu0 %v51
    %599 = vmatpush.msra.mxu0 %v50
    %600 = vmatpush.msra.mxu0 %v49
    %601 = vmatpush.msra.mxu0 %v48
    %602 = vmatpush.msra.mxu0 %v47
    %603 = vmatpush.msra.mxu0 %v46
    %604 = vmatpush.msra.mxu0 %v45
    %605 = vmatpush.msra.mxu0 %v44
    %606 = vmatpush.msra.mxu0 %v43
    %607 = vmatpush.msra.mxu0 %v42
    %608 = vmatmul.f32.gmra.mxu0 %v591
    %v609 = vpop.f32.mrf.mxu0
    %v610 = vadd.f32 0.0, %v609
    %611 = vdwg.mxu0
    %v612 = vsel %vm72, %v610, -inf
    %613 = vmax.xlane.f32.xlu0 %v612
    %v614 = vpop.xlane.xlu0 %613
    %v615 = vsub.f32 %v610, %v614
    %v616 = vmul.f32 %v615, 1.442695
    %v617 = vpow.pop %v616
    %v619 = vsel %vm72, %v617, 0
    %621 = vmatpush.msra.mxu0 0.0
    %622 = vmatpush.msra.mxu0 0.0
    %623 = vmatpush.msra.mxu0 0.0
    %624 = vmatpush.msra.mxu0 0.0
    %625 = vmatpush.msra.mxu0 0.0
    %626 = vmatpush.msra.mxu0 0.0
    %627 = vmatpush.msra.mxu0 0.0
    %628 = vmatpush.msra.mxu0 0.0
    %629 = vmatpush.msra.mxu0 0.0
    %630 = vmatpush.msra.mxu0 0.0
    %631 = vmatpush.msra.mxu0 0.0
    %632 = vmatpush.msra.mxu0 0.0
    %633 = vmatpush.msra.mxu0 0.0
    %634 = vmatpush.msra.mxu0 0.0
    %635 = vmatpush.msra.mxu0 %v60
    %636 = vmatpush.msra.mxu0 %v58
    %637 = vmatmul.f32.gmra.mxu0 %v619
    %v638 = vpop.f32.mrf.mxu0
    %v639 = vadd.f32 0.0, %v638
    %640 = vdwg.mxu0
    %641 = vmatpush.msra.mxu0 0.0
    %642 = vmatpush.msra.mxu0 0.0
    %643 = vmatpush.msra.mxu0 0.0
    %644 = vmatpush.msra.mxu0 0.0
    %645 = vmatpush.msra.mxu0 0.0
    %646 = vmatpush.msra.mxu0 0.0
    %647 = vmatpush.msra.mxu0 0.0
    %648 = vmatpush.msra.mxu0 0.0
    %649 = vmatpush.msra.mxu0 0.0
    %650 = vmatpush.msra.mxu0 0.0
    %651 = vmatpush.msra.mxu0 0.0
    %652 = vmatpush.msra.mxu0 0.0
    %653 = vmatpush.msra.mxu0 0.0
    %654 = vmatpush.msra.mxu0 0.0
    %655 = vmatpush.msra.mxu0 %v61
    %656 = vmatpush.msra.mxu0 %v59
    %657 = vmatmul.f32.gmra.mxu0 %v619
    %v658 = vpop.f32.mrf.mxu0
    %v659 = vadd.f32 0.0, %v658
    %660 = vdwg.mxu0
    %v661 = vrcp.pop %v659
    %v662 = vmul.f32 %v659, %v661
    %v663 = vsub.f32 1.0, %v662
    %v664 = vmul.f32 %v661, %v663
    %v665 = vadd.f32 %v661, %v664
    %vm666 = vweird.f32 %v659
    %vm667 = vweird.f32 %v661
    %vm668 = vmor %vm666, %vm667
    %v669 = vsel %vm668, %v661, %v665
    %v670 = vand.u32 2147483647, %v659
    %vm671 = vcmp.eq.f32.partialorder %v670, 8.507059e+37
    %v672 = vand.u32 %v659, 2147483648
    %v673 = vor.u32 1.1754944e-38, %v672
    %v674 = vsel %vm671, %v673, %v669
    %v675 = vmul.f32 %v639, %v674
    %v676 = vmul.f32 %v675, %v589
    %677 = vmatpush.msra.mxu0 %v527
    %678 = vmatpush.msra.mxu0 %v526
    %679 = vmatpush.msra.mxu0 %v525
    %680 = vmatpush.msra.mxu0 %v524
    %681 = vmatpush.msra.mxu0 %v523
    %682 = vmatpush.msra.mxu0 %v522
    %683 = vmatpush.msra.mxu0 %v521
    %684 = vmatpush.msra.mxu0 %v520
    %685 = vmatpush.msra.mxu0 %v519
    %686 = vmatpush.msra.mxu0 %v518
    %687 = vmatpush.msra.mxu0 %v517
    %688 = vmatpush.msra.mxu0 %v516
    %689 = vmatpush.msra.mxu0 %v515
    %690 = vmatpush.msra.mxu0 %v514
    %691 = vmatpush.msra.mxu0 %v513
    %692 = vmatpush.msra.mxu0 %v512
    %693 = vmatmul.f32.gmra.mxu0 %v676
    %v694 = vpop.f32.mrf.mxu0
    %v695 = vadd.f32 %v499, %v694
    %696 = vdwg.mxu0
    %v697 = vmul.f32 %v695, %v69
    %v698 = vperm.slane %v68, 5
    %v699 = vadd.f32 %v697, %v698
    %v700 = vmax.f32 %v699, 0.0
    %v701 = vperm.slane %v68, 0
    %v703 = vsel %vm125, %v700, 0
    %705 = vmatpush.msra.mxu0 0.0
    %706 = vmatpush.msra.mxu0 0.0
    %707 = vmatpush.msra.mxu0 0.0
    %708 = vmatpush.msra.mxu0 0.0
    %709 = vmatpush.msra.mxu0 0.0
    %710 = vmatpush.msra.mxu0 0.0
    %711 = vmatpush.msra.mxu0 0.0
    %712 = vmatpush.msra.mxu0 0.0
    %713 = vmatpush.msra.mxu0 0.0
    %714 = vmatpush.msra.mxu0 0.0
    %715 = vmatpush.msra.mxu0 0.0
    %716 = vmatpush.msra.mxu0 0.0
    %717 = vmatpush.msra.mxu0 %v67
    %718 = vmatpush.msra.mxu0 %v66
    %719 = vmatpush.msra.mxu0 %v65
    %720 = vmatpush.msra.mxu0 %v64
    %721 = vmatmul.f32.gmra.mxu0 %v703
    %v722 = vpop.f32.mrf.mxu0
    %v723 = vadd.f32 %v701, %v722
    %724 = vdwg.mxu0
    %725 = vst [vmem:[#allocation7] sm:$0xff] %v723
    // Predicated region
    $region18: #{tpu_custom_call.1} parent=1 // pred_check
      _
    $region19: #{tpu_custom_call.1} parent=1 // pred_check_branch
      %727 = sbr.rel (0) target = $region21
    $region20: #{tpu_custom_call.1} parent=1 // pred_region
      %729 = vsyncadd [#allocation4], 0
      %s731 = sshll.u32 [#allocation7], 4
      %s732 = int_to_ptr.vmem [resolvable:$true] %s731
      %s733 = sshll.u32 %s2, 4
      %s734 = int_to_ptr.hbm [resolvable:$true] %s733
      %736 = dma.vmem_to_hbm [thread:$0]  %s732, 128, %s734, [#allocation4]
    $region21: #{tpu_custom_call.1} parent=1 // pred_fallthru
      _
    // Predicated region
    $region22: #{tpu_custom_call.1} parent=1 // pred_check
      _
    $region23: #{tpu_custom_call.1} parent=1 // pred_check_branch
      %738 = sbr.rel (0) target = $region25
    $region24: #{tpu_custom_call.1} parent=1 // pred_region
      %740 = dma.done [#allocation4], 128
    $region25: #{tpu_custom_call.1} parent=1 // pred_fallthru
      _
    %741 = vsyncpa [#allocation3], 1
    %742 = vsyncpa [#allocation6], 1
    %743 = vsyncpa [#allocation4], 1

</llo_original>
